<compile_context>
chip_gen: v7x
topology: tpu7x:2x2x1
jax: 0.10.0
libtpu: 0.0.40
codegen_flags: <defaults>
</compile_context>

<pallas_src>
import jax
import jax.numpy as jnp
from jax import lax
from jax.experimental import pallas as pl
from jax.experimental.pallas import tpu as pltpu


def _conv_stats_kernel(p_ref, w_ref, y_ref, s_ref, q_ref):
    # One spatial tile: (TR, 4*Cin) @ (4*Cin, 4*Cout) -> (TR, 4*Cout), f32 accumulate.
    acc = jnp.dot(p_ref[...], w_ref[...], preferred_element_type=jnp.float32)
    y_ref[...] = acc.astype(y_ref.dtype)
    # Per-tile partial BN statistics (kept in f32 from the f32 accumulator).
    ssum = jnp.sum(acc, axis=0, keepdims=True)          # (1, 4*Cout)
    qsum = jnp.sum(acc * acc, axis=0, keepdims=True)    # (1, 4*Cout)
    s_ref[...] = ssum.reshape(s_ref.shape)
    q_ref[...] = qsum.reshape(q_ref.shape)


def _bn_relu_kernel(y_ref, sc_ref, sh_ref, o_ref):
    # Lane-dense elementwise pass: y is bf16, scale/shift are f32 lane vectors.
    y = y_ref[...].astype(jnp.float32)
    o_ref[...] = jnp.maximum(y * sc_ref[...] + sh_ref[...], 0.0)


def upsampler_block_forward(x_nchw, w_t, bias, gamma, beta, eps=1e-3,
                            block_rows=512, compute_dtype=jnp.bfloat16):
    """w_t: ConvTranspose2d weight, shape (Cin, Cout, 3, 3) as in PyTorch.

    Note: `bias` is accepted for API fidelity but cancels analytically under
    training-mode BatchNorm (it only shifts the per-channel mean), so it is folded out.
    """
    N, Cin, H, W = x_nchw.shape
    Cout = w_t.shape[1]
    Ho, Wo = 2 * H, 2 * W
    R = N * H * W                     # flattened input spatial positions
    CW = 4 * Cout                     # phase-packed output channels

    # ---- 2x2 neighborhood patches (no 9x zero-inserted im2col) -----------------
    x = jnp.transpose(x_nchw, (0, 2, 3, 1)).astype(jnp.float32)            # NHWC
    xr = jnp.pad(x, ((0, 0), (0, 0), (0, 1), (0, 0)))[:, :, 1:, :]          # x[m, n+1]
    xd = jnp.pad(x, ((0, 0), (0, 1), (0, 0), (0, 0)))[:, 1:, :, :]          # x[m+1, n]
    xdr = jnp.pad(x, ((0, 0), (0, 1), (0, 1), (0, 0)))[:, 1:, 1:, :]        # x[m+1, n+1]
    patches = jnp.concatenate([x, xr, xd, xdr], axis=-1).reshape(R, 4 * Cin)
    patches = patches.astype(compute_dtype)

    # Spatial tiling (TR kept a multiple of 32 so every later reshape is exact).
    TR = max(32, (int(block_rows) // 32) * 32)
    n_tiles = -(-R // TR)
    R_pad = n_tiles * TR
    if R_pad != R:
        # Zero rows produce zero conv output -> contribute nothing to the BN sums.
        patches = jnp.pad(patches, ((0, R_pad - R), (0, 0)))

    # ---- fused phase weights: (tap dh,dw, ci) x (phase a,b, co) -----------------
    # out[2m+a, 2n+b, co] = sum_{dh,dw,ci} x[m+dh, n+dw, ci] * w_t[ci, co, a+1-2dh, b+1-2dw]
    wt = jnp.asarray(w_t, jnp.float32)
    wf = jnp.zeros((2, 2, Cin, 2, 2, Cout), jnp.float32)
    for dh in (0, 1):
        for dw in (0, 1):
            for a in (0, 1):
                for b in (0, 1):
                    kh = a - 2 * dh + 1
                    kw = b - 2 * dw + 1
                    if 0 <= kh <= 2 and 0 <= kw <= 2:
                        wf = wf.at[dh, dw, :, a, b, :].set(wt[:, :, kh, kw])
    wmat = wf.reshape(4 * Cin, CW).astype(compute_dtype)

    # ---- conv (phase-fused matmul) + per-tile partial BN stats -------------------
    conv_fn = pl.pallas_call(
        _conv_stats_kernel,
        out_shape=(
            jax.ShapeDtypeStruct((R_pad, CW), compute_dtype),        # phase-packed conv out
            jax.ShapeDtypeStruct((n_tiles, 1, CW), jnp.float32),     # per-tile sum
            jax.ShapeDtypeStruct((n_tiles, 1, CW), jnp.float32),     # per-tile sum of squares
        ),
        grid_spec=pltpu.PrefetchScalarGridSpec(
            num_scalar_prefetch=0,
            grid=(n_tiles,),
            in_specs=[
                pl.BlockSpec((TR, 4 * Cin), lambda i: (i, 0)),
                pl.BlockSpec((4 * Cin, CW), lambda i: (0, 0)),
            ],
            out_specs=[
                pl.BlockSpec((TR, CW), lambda i: (i, 0)),
                pl.BlockSpec((1, 1, CW), lambda i: (i, 0, 0)),
                pl.BlockSpec((1, 1, CW), lambda i: (i, 0, 0)),
            ],
        ),
        # Blocks are a few hundred KiB at real ERFNet sizes -> safe on v7x's 64 MiB
        # VMEM / default scoped limits; grid axis is parallel for megacore.
        compiler_params=pltpu.CompilerParams(dimension_semantics=("parallel",)),
    )
    y, s_part, q_part = conv_fn(patches, wmat)

    # ---- BatchNorm (training mode): combine partial stats, fold bias out ---------
    count = jnp.float32(N * Ho * Wo)
    s = jnp.sum(s_part, axis=(0, 1)).reshape(4, Cout).sum(axis=0)      # per-channel sum
    q = jnp.sum(q_part, axis=(0, 1)).reshape(4, Cout).sum(axis=0)      # per-channel sumsq
    mean = s / count
    # Clamp guards E[x^2]-E[x]^2 cancellation; partial per-tile f32 sums already help.
    var = jnp.maximum(q / count - mean * mean, 0.0)
    invstd = lax.rsqrt(var + eps)
    scale = gamma.astype(jnp.float32) * invstd
    shift = beta.astype(jnp.float32) - mean * scale     # conv bias cancels exactly here

    # ---- lane-dense BN + ReLU -----------------------------------------------------
    if 128 % Cout == 0:
        LANEW = max(128, CW)          # multiple of 128 and of CW
    else:
        LANEW = CW                    # fallback: full-row blocks, not lane-padded
    S = LANEW // CW                   # spatial positions folded into the lane axis
    Mrows = R_pad // S
    y2 = y.reshape(Mrows, LANEW)      # pure reshape (same memory order)

    reps = LANEW // Cout              # channel of lane l is (l % Cout)
    scale_l = jnp.tile(scale, reps).reshape(1, LANEW)
    shift_l = jnp.tile(shift, reps).reshape(1, LANEW)

    TB = Mrows
    for cand in (2048, 1024, 512, 256, 128, 64, 32, 16, 8):
        if Mrows % cand == 0:
            TB = cand
            break
    n_bn = Mrows // TB

    bn_fn = pl.pallas_call(
        _bn_relu_kernel,
        out_shape=jax.ShapeDtypeStruct((Mrows, LANEW), jnp.float32),
        grid_spec=pltpu.PrefetchScalarGridSpec(
            num_scalar_prefetch=0,
            grid=(n_bn,),
            in_specs=[
                pl.BlockSpec((TB, LANEW), lambda i: (i, 0)),
                pl.BlockSpec((1, LANEW), lambda i: (0, 0)),
                pl.BlockSpec((1, LANEW), lambda i: (0, 0)),
            ],
            out_specs=pl.BlockSpec((TB, LANEW), lambda i: (i, 0)),
        ),
        compiler_params=pltpu.CompilerParams(dimension_semantics=("parallel",)),
    )
    out_flat = bn_fn(y2, scale_l, shift_l)

    # ---- phase -> pixel interleave (depth-to-space) and back to NCHW --------------
    out = out_flat.reshape(R_pad, CW)[:R].reshape(N, H, W, 2, 2, Cout)
    out = jnp.transpose(out, (0, 5, 1, 3, 2, 4)).reshape(N, Cout, Ho, Wo)
    return out


def reference_forward(x_nchw, w_t, bias, gamma, beta, eps=1e-3):
    """Pure-JAX reference (XLA conv path) matching PyTorch semantics."""
    rhs = jnp.transpose(w_t, (1, 0, 2, 3))[:, :, ::-1, ::-1]   # (Cout, Cin, kh, kw), flipped
    y = lax.conv_general_dilated(
        x_nchw.astype(jnp.float32), rhs.astype(jnp.float32),
        window_strides=(1, 1), padding=((1, 2), (1, 2)),
        lhs_dilation=(2, 2), rhs_dilation=(1, 1),
        dimension_numbers=("NCHW", "OIHW", "NCHW"),
        precision=lax.Precision.HIGHEST,
    )
    y = y + bias[None, :, None, None]
    mean = jnp.mean(y, axis=(0, 2, 3), keepdims=True)
    var = jnp.mean((y - mean) ** 2, axis=(0, 2, 3), keepdims=True)
    yhat = (y - mean) / jnp.sqrt(var + eps)
    out = gamma[None, :, None, None] * yhat + beta[None, :, None, None]
    return jnp.maximum(out, 0.0)


if __name__ == "__main__":
    key = jax.random.PRNGKey(0)
    N, Cin, H, W = 2, 4, 16, 16      # ninput = 4
    Cout = 8                         # noutput = 8
    k1, k2, k3, k4, k5 = jax.random.split(key, 5)

    x = jax.random.normal(k1, (N, Cin, H, W), jnp.float32)
    # ConvTranspose2d weight shape: (in_channels, out_channels, 3, 3)
    w_t = 0.1 * jax.random.normal(k2, (Cin, Cout, 3, 3), jnp.float32)
    bias = 0.1 * jax.random.normal(k3, (Cout,), jnp.float32)
    gamma = 1.0 + 0.1 * jax.random.normal(k4, (Cout,), jnp.float32)
    beta = 0.1 * jax.random.normal(k5, (Cout,), jnp.float32)

    # block_rows=256 exercises multi-tile grids + partial-stats reduction at this size.
    fwd = jax.jit(lambda *a: upsampler_block_forward(*a, block_rows=256))
    out = jax.block_until_ready(fwd(x, w_t, bias, gamma, beta))
    assert out.shape == (N, Cout, 2 * H, 2 * W), out.shape

    ref = reference_forward(x, w_t, bias, gamma, beta)
    if not jnp.allclose(out, ref, atol=3e-2, rtol=3e-2):   # bf16 streaming tolerance
        max_err = float(jnp.max(jnp.abs(out - ref)))
        raise AssertionError(f"mismatch vs reference, max abs err = {max_err}")

    print("KERNEL_OK")
</pallas_src>

<mosaic_0001>
module attributes {stable_mosaic.version = 11 : i64} {
  func.func @_conv_stats_kernel(%arg0: i32, %arg1: memref<256x16xbf16, #tpu.memory_space<vmem>>, %arg2: memref<16x32xbf16, #tpu.memory_space<vmem>>, %arg3: memref<256x32xbf16, #tpu.memory_space<vmem>>, %arg4: memref<1x1x32xf32, #tpu.memory_space<vmem>>, %arg5: memref<1x1x32xf32, #tpu.memory_space<vmem>>) attributes {dimension_semantics = [#tpu.dimension_semantics<parallel>], iteration_bounds = array<i64: 2>, scalar_prefetch = 0 : i64, scratch_operands = 0 : i64, tpu.core_type = #tpu.core_type<tc>, window_params = [{transform_indices = @transform_0, window_bounds = array<i64: 256, 16>}, {pipeline_mode = #tpu.pipeline_mode<synchronous>, transform_indices = @transform_1, window_bounds = array<i64: 16, 32>}, {transform_indices = @transform_2, window_bounds = array<i64: 256, 32>}, {transform_indices = @transform_3, window_bounds = array<i64: 1, 1, 32>}, {transform_indices = @transform_4, window_bounds = array<i64: 1, 1, 32>}]} {
    %c0 = arith.constant 0 : index
    %c0_0 = arith.constant 0 : index
    %0 = vector.load %arg1[%c0, %c0_0] : memref<256x16xbf16, #tpu.memory_space<vmem>>, vector<256x16xbf16>
    %c0_1 = arith.constant 0 : index
    %c0_2 = arith.constant 0 : index
    %1 = vector.load %arg2[%c0_1, %c0_2] : memref<16x32xbf16, #tpu.memory_space<vmem>>, vector<16x32xbf16>
    %cst = arith.constant dense<0.000000e+00> : vector<256x32xf32>
    %2 = tpu.matmul %0, %1, %cst {dimension_numbers = #tpu.dot_dimension_numbers<[1], [0], [0], [1], [0, 0, 1, 1], [], []>} : vector<256x16xbf16>, vector<16x32xbf16>, vector<256x32xf32> -> vector<256x32xf32>
    %3 = arith.truncf %2 : vector<256x32xf32> to vector<256x32xbf16>
    %c0_3 = arith.constant 0 : index
    %c0_4 = arith.constant 0 : index
    %4 = vector.load %arg3[%c0_3, %c0_4] : memref<256x32xbf16, #tpu.memory_space<vmem>>, vector<256x32xbf16>
    tpu.vector_store %arg3[%c0_3, %c0_4], %3 {strides = array<i32>} : memref<256x32xbf16, #tpu.memory_space<vmem>>, vector<256x32xbf16>,
    %cst_5 = arith.constant dense<0.000000e+00> : vector<32xf32>
    %5 = vector.multi_reduction <add>, %2, %cst_5 [0] : vector<256x32xf32> to vector<32xf32>
    %6 = vector.shape_cast %5 : vector<32xf32> to vector<1x32xf32>
    %7 = arith.mulf %2, %2 : vector<256x32xf32>
    %cst_6 = arith.constant dense<0.000000e+00> : vector<32xf32>
    %8 = vector.multi_reduction <add>, %7, %cst_6 [0] : vector<256x32xf32> to vector<32xf32>
    %9 = vector.shape_cast %8 : vector<32xf32> to vector<1x32xf32>
    %10 = vector.shape_cast %6 : vector<1x32xf32> to vector<1x1x32xf32>
    %c0_7 = arith.constant 0 : index
    %c0_8 = arith.constant 0 : index
    %c0_9 = arith.constant 0 : index
    %11 = vector.load %arg4[%c0_7, %c0_8, %c0_9] : memref<1x1x32xf32, #tpu.memory_space<vmem>>, vector<1x1x32xf32>
    tpu.vector_store %arg4[%c0_7, %c0_8, %c0_9], %10 {strides = array<i32>} : memref<1x1x32xf32, #tpu.memory_space<vmem>>, vector<1x1x32xf32>,
    %12 = vector.shape_cast %9 : vector<1x32xf32> to vector<1x1x32xf32>
    %c0_10 = arith.constant 0 : index
    %c0_11 = arith.constant 0 : index
    %c0_12 = arith.constant 0 : index
    %13 = vector.load %arg5[%c0_10, %c0_11, %c0_12] : memref<1x1x32xf32, #tpu.memory_space<vmem>>, vector<1x1x32xf32>
    tpu.vector_store %arg5[%c0_10, %c0_11, %c0_12], %12 {strides = array<i32>} : memref<1x1x32xf32, #tpu.memory_space<vmem>>, vector<1x1x32xf32>,
    return
  }
  func.func @transform_0(%arg0: i32) -> (i32, i32) {
    %c0_i32 = arith.constant 0 : i32
    %c0_i32_0 = arith.constant 0 : i32
    return %arg0, %c0_i32 : i32, i32
  }
  func.func @transform_1(%arg0: i32) -> (i32, i32) {
    %c0_i32 = arith.constant 0 : i32
    %c0_i32_0 = arith.constant 0 : i32
    %c0_i32_1 = arith.constant 0 : i32
    return %c0_i32, %c0_i32_0 : i32, i32
  }
  func.func @transform_2(%arg0: i32) -> (i32, i32) {
    %c0_i32 = arith.constant 0 : i32
    %c0_i32_0 = arith.constant 0 : i32
    return %arg0, %c0_i32 : i32, i32
  }
  func.func @transform_3(%arg0: i32) -> (i32, i32, i32) {
    %c0_i32 = arith.constant 0 : i32
    %c0_i32_0 = arith.constant 0 : i32
    %c0_i32_1 = arith.constant 0 : i32
    return %arg0, %c0_i32, %c0_i32_0 : i32, i32, i32
  }
  func.func @transform_4(%arg0: i32) -> (i32, i32, i32) {
    %c0_i32 = arith.constant 0 : i32
    %c0_i32_0 = arith.constant 0 : i32
    %c0_i32_1 = arith.constant 0 : i32
    return %arg0, %c0_i32, %c0_i32_0 : i32, i32, i32
  }
}

module attributes {stable_mosaic.version = 11 : i64} {
  func.func @_bn_relu_kernel(%arg0: i32, %arg1: memref<128x128xbf16, #tpu.memory_space<vmem>>, %arg2: memref<1x128xf32, #tpu.memory_space<vmem>>, %arg3: memref<1x128xf32, #tpu.memory_space<vmem>>, %arg4: memref<128x128xf32, #tpu.memory_space<vmem>>) attributes {dimension_semantics = [#tpu.dimension_semantics<parallel>], iteration_bounds = array<i64: 1>, scalar_prefetch = 0 : i64, scratch_operands = 0 : i64, tpu.core_type = #tpu.core_type<tc>, window_params = [{transform_indices = @transform_0, window_bounds = array<i64: 128, 128>}, {pipeline_mode = #tpu.pipeline_mode<synchronous>, transform_indices = @transform_1, window_bounds = array<i64: 1, 128>}, {pipeline_mode = #tpu.pipeline_mode<synchronous>, transform_indices = @transform_2, window_bounds = array<i64: 1, 128>}, {transform_indices = @transform_3, window_bounds = array<i64: 128, 128>}]} {
    %c0 = arith.constant 0 : index
    %c0_0 = arith.constant 0 : index
    %0 = vector.load %arg1[%c0, %c0_0] : memref<128x128xbf16, #tpu.memory_space<vmem>>, vector<128x128xbf16>
    %1 = arith.extf %0 : vector<128x128xbf16> to vector<128x128xf32>
    %c0_1 = arith.constant 0 : index
    %c0_2 = arith.constant 0 : index
    %2 = vector.load %arg2[%c0_1, %c0_2] : memref<1x128xf32, #tpu.memory_space<vmem>>, vector<1x128xf32>
    %3 = vector.broadcast %2 : vector<1x128xf32> to vector<128x128xf32>
    %4 = arith.mulf %1, %3 : vector<128x128xf32>
    %c0_3 = arith.constant 0 : index
    %c0_4 = arith.constant 0 : index
    %5 = vector.load %arg3[%c0_3, %c0_4] : memref<1x128xf32, #tpu.memory_space<vmem>>, vector<1x128xf32>
    %6 = vector.broadcast %5 : vector<1x128xf32> to vector<128x128xf32>
    %7 = arith.addf %4, %6 : vector<128x128xf32>
    %cst = arith.constant 0.000000e+00 : f32
    %8 = vector.broadcast %cst : f32 to vector<128x128xf32>
    %9 = arith.maximumf %7, %8 : vector<128x128xf32>
    %c0_5 = arith.constant 0 : index
    %c0_6 = arith.constant 0 : index
    %10 = vector.load %arg4[%c0_5, %c0_6] : memref<128x128xf32, #tpu.memory_space<vmem>>, vector<128x128xf32>
    tpu.vector_store %arg4[%c0_5, %c0_6], %9 {strides = array<i32>} : memref<128x128xf32, #tpu.memory_space<vmem>>, vector<128x128xf32>,
    return
  }
  func.func @transform_0(%arg0: i32) -> (i32, i32) {
    %c0_i32 = arith.constant 0 : i32
    %c0_i32_0 = arith.constant 0 : i32
    return %arg0, %c0_i32 : i32, i32
  }
  func.func @transform_1(%arg0: i32) -> (i32, i32) {
    %c0_i32 = arith.constant 0 : i32
    %c0_i32_0 = arith.constant 0 : i32
    %c0_i32_1 = arith.constant 0 : i32
    return %c0_i32, %c0_i32_0 : i32, i32
  }
  func.func @transform_2(%arg0: i32) -> (i32, i32) {
    %c0_i32 = arith.constant 0 : i32
    %c0_i32_0 = arith.constant 0 : i32
    %c0_i32_1 = arith.constant 0 : i32
    return %c0_i32, %c0_i32_0 : i32, i32
  }
  func.func @transform_3(%arg0: i32) -> (i32, i32) {
    %c0_i32 = arith.constant 0 : i32
    %c0_i32_0 = arith.constant 0 : i32
    return %arg0, %c0_i32 : i32, i32
  }
}

</mosaic_0001>

<llo_original>
// kernel: tile.18
$region0: #{tile.18}
  #allocation0 [shape = 's32[1]{0}', space=sflag, size = 0x4, scoped, tag = 'scoped memory for tile.18']
  %s0 = inlined_call_operand.vmem [shape: f32[8], index: 0, kind: input, shape index: {}]
  %s1 = inlined_call_operand.vmem [shape: f32[16,8], index: 1, kind: output, shape index: {}]
  // Predicated region
  $region2: #{tile.18} parent=0 // pred_check
    _
  $region3: #{tile.18} parent=0 // pred_check_branch
    %3 = sbr.rel (0) target = $region5
  $region4: #{tile.18} parent=0 // pred_region
    _
  $region5: #{tile.18} parent=0 // pred_fallthru
    _
  %v4 = vld [vmem:[%s0] ss:$0 sm:$0xff]
  %5 = vst [vmem:[%s1] sm:$0xff] %v4
  %s6 = scalar_lea.vmem %s1, 8
  %7 = vst [vmem:[%s6] sm:$0xff] %v4

// kernel: tile.19
$region0: #{tile.19}
  %s0 = inlined_call_operand.vmem [shape: f32[16,8], index: 0, kind: input, shape index: {}]
  %s1 = inlined_call_operand.vmem [shape: f32[1,128], index: 1, kind: output, shape index: {}]
  $region1: #{tile.19} parent=0
    #allocation0 [shape = 'u8[4096]{0}', space=vmem, size = 0x1000, scoped, tag = 'scoped mem for output reshape']
    %v2 = vld [vmem:[%s0] sm:$0x1]
    %vm3 = vcmask 64512
    %4 = vst.msk [vmem:[#allocation0] sm:$0x1] %vm3, %v2
    %s5 = scalar_lea.vmem %s0, 15
    %v6 = vld [vmem:[%s5] sm:$0x1]
    %7 = vrot.lane.b32.xlu0 %v6, 120
    %v8 = vpop.permute.xlu0 %7
    %vm9 = vcmask 1048512
    %10 = vst.msk [vmem:[#allocation0] sm:$0x1] %vm9, %v8
    %s11 = scalar_lea.vmem %s0, 14
    %v12 = vld [vmem:[%s11] sm:$0x1]
    %13 = vrot.lane.b32.xlu0 %v12, 112
    %v14 = vpop.permute.xlu0 %13
    %vm15 = vcmask 982912
    %16 = vst.msk [vmem:[#allocation0] sm:$0x1] %vm15, %v14
    %s17 = scalar_lea.vmem %s0, 13
    %v18 = vld [vmem:[%s17] sm:$0x1]
    %19 = vrot.lane.b32.xlu0 %v18, 104
    %v20 = vpop.permute.xlu0 %19
    %vm21 = vcmask 917312
    %22 = vst.msk [vmem:[#allocation0] sm:$0x1] %vm21, %v20
    %s23 = scalar_lea.vmem %s0, 12
    %v24 = vld [vmem:[%s23] sm:$0x1]
    %25 = vrot.lane.b32.xlu0 %v24, 96
    %v26 = vpop.permute.xlu0 %25
    %vm27 = vcmask 851712
    %28 = vst.msk [vmem:[#allocation0] sm:$0x1] %vm27, %v26
    %s29 = scalar_lea.vmem %s0, 11
    %v30 = vld [vmem:[%s29] sm:$0x1]
    %31 = vrot.lane.b32.xlu0 %v30, 88
    %v32 = vpop.permute.xlu0 %31
    %vm33 = vcmask 786112
    %34 = vst.msk [vmem:[#allocation0] sm:$0x1] %vm33, %v32
    %s35 = scalar_lea.vmem %s0, 10
    %v36 = vld [vmem:[%s35] sm:$0x1]
    %37 = vrot.lane.b32.xlu0 %v36, 80
    %v38 = vpop.permute.xlu0 %37
    %vm39 = vcmask 720512
    %40 = vst.msk [vmem:[#allocation0] sm:$0x1] %vm39, %v38
    %s41 = scalar_lea.vmem %s0, 9
    %v42 = vld [vmem:[%s41] sm:$0x1]
    %43 = vrot.lane.b32.xlu0 %v42, 72
    %v44 = vpop.permute.xlu0 %43
    %vm45 = vcmask 654912
    %46 = vst.msk [vmem:[#allocation0] sm:$0x1] %vm45, %v44
    %s47 = scalar_lea.vmem %s0, 8
    %v48 = vld [vmem:[%s47] sm:$0x1]
    %49 = vrot.lane.b32.xlu0 %v48, 64
    %v50 = vpop.permute.xlu0 %49
    %vm51 = vcmask 589312
    %52 = vst.msk [vmem:[#allocation0] sm:$0x1] %vm51, %v50
    %s53 = scalar_lea.vmem %s0, 7
    %v54 = vld [vmem:[%s53] sm:$0x1]
    %55 = vrot.lane.b32.xlu0 %v54, 56
    %v56 = vpop.permute.xlu0 %55
    %vm57 = vcmask 523712
    %58 = vst.msk [vmem:[#allocation0] sm:$0x1] %vm57, %v56
    %s59 = scalar_lea.vmem %s0, 6
    %v60 = vld [vmem:[%s59] sm:$0x1]
    %61 = vrot.lane.b32.xlu0 %v60, 48
    %v62 = vpop.permute.xlu0 %61
    %vm63 = vcmask 458112
    %64 = vst.msk [vmem:[#allocation0] sm:$0x1] %vm63, %v62
    %s65 = scalar_lea.vmem %s0, 5
    %v66 = vld [vmem:[%s65] sm:$0x1]
    %67 = vrot.lane.b32.xlu0 %v66, 40
    %v68 = vpop.permute.xlu0 %67
    %vm69 = vcmask 392512
    %70 = vst.msk [vmem:[#allocation0] sm:$0x1] %vm69, %v68
    %s71 = scalar_lea.vmem %s0, 4
    %v72 = vld [vmem:[%s71] sm:$0x1]
    %73 = vrot.lane.b32.xlu0 %v72, 32
    %v74 = vpop.permute.xlu0 %73
    %vm75 = vcmask 326912
    %76 = vst.msk [vmem:[#allocation0] sm:$0x1] %vm75, %v74
    %s77 = scalar_lea.vmem %s0, 3
    %v78 = vld [vmem:[%s77] sm:$0x1]
    %79 = vrot.lane.b32.xlu0 %v78, 24
    %v80 = vpop.permute.xlu0 %79
    %vm81 = vcmask 261312
    %82 = vst.msk [vmem:[#allocation0] sm:$0x1] %vm81, %v80
    %s83 = scalar_lea.vmem %s0, 2
    %v84 = vld [vmem:[%s83] sm:$0x1]
    %85 = vrot.lane.b32.xlu0 %v84, 16
    %v86 = vpop.permute.xlu0 %85
    %vm87 = vcmask 195712
    %88 = vst.msk [vmem:[#allocation0] sm:$0x1] %vm87, %v86
    %s89 = scalar_lea.vmem %s0, 1
    %v90 = vld [vmem:[%s89] sm:$0x1]
    %91 = vrot.lane.b32.xlu0 %v90, 8
    %v92 = vpop.permute.xlu0 %91
    %vm93 = vcmask 130112
    %94 = vst.msk [vmem:[#allocation0] sm:$0x1] %vm93, %v92
    %s96 = sshllo.u32 0, 1
    %v98 = vld [vmem:[#allocation0] sm:%s96]
    %s99 = sshllo.u32 0, 1
    %100 = vst [vmem:[%s1] sm:%s99] %v98

// kernel: _lambda_.2
$region0: #{_lambda_.2}
  #allocation0 [shape = 'u32[]', space=smem, size = 0x4, offset = 0x4, fixed_abs, tag = 'smem constant byte address 0x4 - core index']
  #allocation1 [shape = 'u32[144,128]{1,0:T(1,128)}', space=vmem, size = 0x12000, scoped, tag = 'internal scratch']
  %s0 = inlined_call_operand.vmem [shape: bf16[512,16], index: 0, kind: input, shape index: {}]
  %s1 = inlined_call_operand.vmem [shape: bf16[16,32], index: 1, kind: input, shape index: {}]
  %s2 = inlined_call_operand.vmem [shape: bf16[512,32], index: 2, kind: output, shape index: {0}]
  %s3 = inlined_call_operand.vmem [shape: f32[2,1,32], index: 3, kind: output, shape index: {1}]
  %s4 = inlined_call_operand.vmem [shape: f32[2,1,32], index: 4, kind: output, shape index: {2}]
  %5 = xla_tuple %s2, %s3, %s4
  %s6 = sld [smem:[#allocation0]]
  $region57: #{_lambda_.2} parent=0
    _
  %s8 = ssub.s32 1, %s6
  %s9 = scalar_select 0, %s8, %s6
  loop: start=0, step=1, limit=4
  $region2: #{_lambda_.2} parent=0 // loop_pre_header
    _
  $region3: #{_lambda_.2} parent=0 // loop_header
    %s11 = sphi 0, %s15
    %p12 = scmp.ge.s32.totalorder %s11, 4
    %s21 = sphi 0, %s23
    %s24 = sphi 0, %s21
    %s25 = sphi 0, %s24
    %s41 = sphi 0, %s25
    %s45 = sphi 0, %s45
    %s47 = sphi 0, %s45
    %s48 = sphi 0, %s47
    %s62 = sphi 0, %s48
    %s68 = sphi 0, %s70
    %s71 = sphi 0, %s68
    %s72 = sphi 0, %s71
    %s88 = sphi 0, %s72
    %s94 = sphi 0, %s96
    %s97 = sphi 0, %s94
    %s98 = sphi 0, %s97
    %s114 = sphi 0, %s98
    %s120 = sphi 0, %s122
    %s123 = sphi 0, %s120
    %s124 = sphi 0, %s123
    %s140 = sphi 0, %s124
  $region4: #{_lambda_.2} parent=0 // loop_header_branch
    %14 = sbr.rel (%p12) target = $region8
  $region5: #{_lambda_.2} parent=0 // loop_body
    %s16 = ssub.s32 %s11, 1
    %s17 = ssub.s32 %s11, 2
    %s18 = sadd.s32 %s11, 1
    %s19 = ssub.s32 %s11, %s18
    %p20 = scmp.eq.s32.totalorder %s19, 0
    %s22 = sadd.s32 %s21, 1
    %s23 = scalar_select %p20, %s21, %s22
    %p26 = pneg %p20
    %p27 = scmp.eq.s32.totalorder %s11, 1
    %p28 = por %p26, %p27
    %p29 = scmp.ne.s32.totalorder %s21, %s24
    %p30 = scmp.eq.s32.totalorder %s11, 0
    %p31 = por %p29, %p30
    %p32 = scmp.ne.s32.totalorder %s21, %s24
    %p33 = scmp.eq.s32.totalorder %s16, 1
    %p34 = por %p32, %p33
    %p35 = scmp.ne.s32.totalorder %s24, %s25
    %p36 = scmp.eq.s32.totalorder %s16, 0
    %p37 = por %p35, %p36
    %p38 = scmp.ne.s32.totalorder %s24, %s25
    %p39 = scmp.eq.s32.totalorder %s17, 1
    %p40 = por %p38, %p39
    %p42 = scmp.ne.s32.totalorder %s25, %s41
    %p43 = scmp.eq.s32.totalorder %s17, 0
    %p44 = por %p42, %p43
    %s46 = sadd.s32 %s45, 1
    %p49 = scmp.eq.s32.totalorder %s11, 1
    %p50 = scmp.ne.s32.totalorder %s45, %s47
    %p51 = scmp.eq.s32.totalorder %s11, 0
    %p52 = por %p50, %p51
    %p53 = scmp.ne.s32.totalorder %s45, %s47
    %p54 = scmp.eq.s32.totalorder %s16, 1
    %p55 = por %p53, %p54
    %p56 = scmp.ne.s32.totalorder %s47, %s48
    %p57 = scmp.eq.s32.totalorder %s16, 0
    %p58 = por %p56, %p57
    %p59 = scmp.ne.s32.totalorder %s47, %s48
    %p60 = scmp.eq.s32.totalorder %s17, 1
    %p61 = por %p59, %p60
    %p63 = scmp.ne.s32.totalorder %s48, %s62
    %p64 = scmp.eq.s32.totalorder %s17, 0
    %p65 = por %p63, %p64
    %s66 = ssub.s32 %s11, %s18
    %p67 = scmp.eq.s32.totalorder %s66, 0
    %s69 = sadd.s32 %s68, 1
    %s70 = scalar_select %p67, %s68, %s69
    %p73 = pneg %p67
    %p74 = scmp.eq.s32.totalorder %s11, 1
    %p75 = por %p73, %p74
    %p76 = scmp.ne.s32.totalorder %s68, %s71
    %p77 = scmp.eq.s32.totalorder %s11, 0
    %p78 = por %p76, %p77
    %p79 = scmp.ne.s32.totalorder %s68, %s71
    %p80 = scmp.eq.s32.totalorder %s16, 1
    %p81 = por %p79, %p80
    %p82 = scmp.ne.s32.totalorder %s71, %s72
    %p83 = scmp.eq.s32.totalorder %s16, 0
    %p84 = por %p82, %p83
    %p85 = scmp.ne.s32.totalorder %s71, %s72
    %p86 = scmp.eq.s32.totalorder %s17, 1
    %p87 = por %p85, %p86
    %p89 = scmp.ne.s32.totalorder %s72, %s88
    %p90 = scmp.eq.s32.totalorder %s17, 0
    %p91 = por %p89, %p90
    %s92 = ssub.s32 %s11, %s18
    %p93 = scmp.eq.s32.totalorder %s92, 0
    %s95 = sadd.s32 %s94, 1
    %s96 = scalar_select %p93, %s94, %s95
    %p99 = pneg %p93
    %p100 = scmp.eq.s32.totalorder %s11, 1
    %p101 = por %p99, %p100
    %p102 = scmp.ne.s32.totalorder %s94, %s97
    %p103 = scmp.eq.s32.totalorder %s11, 0
    %p104 = por %p102, %p103
    %p105 = scmp.ne.s32.totalorder %s94, %s97
    %p106 = scmp.eq.s32.totalorder %s16, 1
    %p107 = por %p105, %p106
    %p108 = scmp.ne.s32.totalorder %s97, %s98
    %p109 = scmp.eq.s32.totalorder %s16, 0
    %p110 = por %p108, %p109
    %p111 = scmp.ne.s32.totalorder %s97, %s98
    %p112 = scmp.eq.s32.totalorder %s17, 1
    %p113 = por %p111, %p112
    %p115 = scmp.ne.s32.totalorder %s98, %s114
    %p116 = scmp.eq.s32.totalorder %s17, 0
    %p117 = por %p115, %p116
    %s118 = ssub.s32 %s11, %s18
    %p119 = scmp.eq.s32.totalorder %s118, 0
    %s121 = sadd.s32 %s120, 1
    %s122 = scalar_select %p119, %s120, %s121
    %p125 = pneg %p119
    %p126 = scmp.eq.s32.totalorder %s11, 1
    %p127 = por %p125, %p126
    %p128 = scmp.ne.s32.totalorder %s120, %s123
    %p129 = scmp.eq.s32.totalorder %s11, 0
    %p130 = por %p128, %p129
    %p131 = scmp.ne.s32.totalorder %s120, %s123
    %p132 = scmp.eq.s32.totalorder %s16, 1
    %p133 = por %p131, %p132
    %p134 = scmp.ne.s32.totalorder %s123, %s124
    %p135 = scmp.eq.s32.totalorder %s16, 0
    %p136 = por %p134, %p135
    %p137 = scmp.ne.s32.totalorder %s123, %s124
    %p138 = scmp.eq.s32.totalorder %s17, 1
    %p139 = por %p137, %p138
    %p141 = scmp.ne.s32.totalorder %s124, %s140
    %p142 = scmp.eq.s32.totalorder %s17, 0
    %p143 = por %p141, %p142
    %p144 = scmp.le.s32.totalorder 1, %s11
    %p145 = scmp.lt.s32.totalorder %s11, 3
    %p146 = pnand %p144, %p145
    %p147 = pneg %p146
    // Predicated region
    $region9: #{_lambda_.2} parent=5 // pred_check
      _
    $region10: #{_lambda_.2} parent=5 // pred_check_branch
      %149 = sbr.rel (%p146) target = $region12
    $region11: #{_lambda_.2} parent=5 // pred_region
      %s150 = ssub.s32 %s11, 1
      // Predicated region
      $region13: #{_lambda_.2} parent=11 // pred_check
        %p151 = pneg %p58
      $region14: #{_lambda_.2} parent=11 // pred_check_branch
        %153 = sbr.rel (%p151) target = $region16
      $region15: #{_lambda_.2} parent=11 // pred_region
        _
      $region16: #{_lambda_.2} parent=11 // pred_fallthru
        _
    $region12: #{_lambda_.2} parent=5 // pred_fallthru
      _
    %p154 = scmp.lt.s32.totalorder %s11, 2
    // Predicated region
    $region17: #{_lambda_.2} parent=5 // pred_check
      %p155 = pneg %p154
    $region18: #{_lambda_.2} parent=5 // pred_check_branch
      %157 = sbr.rel (%p155) target = $region20
    $region19: #{_lambda_.2} parent=5 // pred_region
      // Predicated region
      $region21: #{_lambda_.2} parent=19 // pred_check
        %p158 = pneg %p31
      $region22: #{_lambda_.2} parent=19 // pred_check_branch
        %160 = sbr.rel (%p158) target = $region24
      $region23: #{_lambda_.2} parent=19 // pred_region
        %s161 = smul.u32 32, %s11
        %p162 = scmp.lt.s32.totalorder %s161, 63
        %s163 = scalar_select %p162, %s161, 63
        %s164 = smul.addr %s163, 4
        %s165 = scalar_lea.vmem %s0, %s164
        %s166 = smul.u32 32, %s11
      $region24: #{_lambda_.2} parent=19 // pred_fallthru
        _
    $region20: #{_lambda_.2} parent=5 // pred_fallthru
      _
    %p167 = scmp.le.s32.totalorder 1, %s11
    %p168 = scmp.lt.s32.totalorder %s11, 3
    %p169 = pnand %p167, %p168
    %p170 = pneg %p169
    // Predicated region
    $region25: #{_lambda_.2} parent=5 // pred_check
      _
    $region26: #{_lambda_.2} parent=5 // pred_check_branch
      %172 = sbr.rel (%p169) target = $region28
    $region27: #{_lambda_.2} parent=5 // pred_region
      %s173 = ssub.s32 %s11, 1
      %s174 = smul.u32 32, %s16
      %p175 = scmp.lt.s32.totalorder %s174, 63
      %s176 = scalar_select %p175, %s174, 63
      %s177 = smul.addr %s176, 4
      %s178 = scalar_lea.vmem %s0, %s177
      %p179 = pneg %p37
      %p180 = pneg %p34
      %p181 = pneg %p58
      %p182 = pneg %p55
      %p183 = pneg %p84
      %p184 = pneg %p81
      %s185 = smul.u32 32, %s16
      %p186 = scmp.lt.s32.totalorder %s185, 63
      %s187 = scalar_select %p186, %s185, 63
      %s188 = smul.addr %s187, 4
      %s189 = scalar_lea.vmem %s2, %s188
      %p190 = pneg %p110
      %p191 = pneg %p107
      %p192 = scmp.lt.s32.totalorder %s16, 1
      %s193 = scalar_select %p192, %s16, 1
      %s194 = scalar_lea.vmem %s3, %s193
      %p195 = pneg %p136
      %p196 = pneg %p133
      %p197 = scmp.lt.s32.totalorder %s16, 1
      %s198 = scalar_select %p197, %s16, 1
      %s199 = scalar_lea.vmem %s4, %s198
      %s200 = smul.u32 32, %s16
      %p201 = scmp.lt.s32.totalorder %s200, 63
      %s202 = scalar_select %p201, %s200, 63
      %s203 = smul.addr %s202, 4
      %s204 = scalar_lea.vmem %s0, %s203
      %s205 = smul.u32 32, %s16
      %s206 = smul.u32 32, %s16
      %p207 = scmp.lt.s32.totalorder %s206, 63
      %s208 = scalar_select %p207, %s206, 63
      %s209 = smul.addr %s208, 4
      %s210 = scalar_lea.vmem %s2, %s209
      %s211 = smul.u32 32, %s16
      %p212 = scmp.lt.s32.totalorder %s16, 1
      %s213 = scalar_select %p212, %s16, 1
      %s214 = scalar_lea.vmem %s3, %s213
      %p215 = scmp.lt.s32.totalorder %s16, 1
      %s216 = scalar_select %p215, %s16, 1
      %s217 = scalar_lea.vmem %s4, %s216
      %v219 = vld [vmem:[%s204] sm:$0xf]
      %v220 = vld [vmem:[%s204 + $0x4] sm:$0xf]
      %v221 = vld [vmem:[%s204 + $0x8] sm:$0xf]
      %v222 = vld [vmem:[%s204 + $0xc] sm:$0xf]
      %v223 = vld [vmem:[%s204 + $0x10] sm:$0xf]
      %v224 = vld [vmem:[%s204 + $0x14] sm:$0xf]
      %v225 = vld [vmem:[%s204 + $0x18] sm:$0xf]
      %v226 = vld [vmem:[%s204 + $0x1c] sm:$0xf]
      %v227 = vld [vmem:[%s204 + $0x20] sm:$0xf]
      %v228 = vld [vmem:[%s204 + $0x24] sm:$0xf]
      %v229 = vld [vmem:[%s204 + $0x28] sm:$0xf]
      %v230 = vld [vmem:[%s204 + $0x2c] sm:$0xf]
      %v231 = vld [vmem:[%s204 + $0x30] sm:$0xf]
      %v232 = vld [vmem:[%s204 + $0x34] sm:$0xf]
      %v233 = vld [vmem:[%s204 + $0x38] sm:$0xf]
      %v234 = vld [vmem:[%s204 + $0x3c] sm:$0xf]
      %v235 = vld [vmem:[%s204 + $0x40] sm:$0xf]
      %v236 = vld [vmem:[%s204 + $0x44] sm:$0xf]
      %v237 = vld [vmem:[%s204 + $0x48] sm:$0xf]
      %v238 = vld [vmem:[%s204 + $0x4c] sm:$0xf]
      %v239 = vld [vmem:[%s204 + $0x50] sm:$0xf]
      %v240 = vld [vmem:[%s204 + $0x54] sm:$0xf]
      %v241 = vld [vmem:[%s204 + $0x58] sm:$0xf]
      %v242 = vld [vmem:[%s204 + $0x5c] sm:$0xf]
      %v243 = vld [vmem:[%s204 + $0x60] sm:$0xf]
      %v244 = vld [vmem:[%s204 + $0x64] sm:$0xf]
      %v245 = vld [vmem:[%s204 + $0x68] sm:$0xf]
      %v246 = vld [vmem:[%s204 + $0x6c] sm:$0xf]
      %v247 = vld [vmem:[%s204 + $0x70] sm:$0xf]
      %v248 = vld [vmem:[%s204 + $0x74] sm:$0xf]
      %v249 = vld [vmem:[%s204 + $0x78] sm:$0xf]
      %v250 = vld [vmem:[%s204 + $0x7c] sm:$0xf]
      %v251 = vld [vmem:[%s1] sm:$0xf]
      %v252 = vld [vmem:[%s1 + $0x4] sm:$0xf]
      %v285 = vunpack.c.l.b16 %v219
      %v286 = vunpack.c.l.b16 %v220
      %v287 = vunpack.c.l.b16 %v221
      %v288 = vunpack.c.l.b16 %v222
      %v289 = vunpack.c.l.b16 %v223
      %v290 = vunpack.c.l.b16 %v224
      %v291 = vunpack.c.l.b16 %v225
      %v292 = vunpack.c.l.b16 %v226
      %v293 = vunpack.c.l.b16 %v227
      %v294 = vunpack.c.l.b16 %v228
      %v295 = vunpack.c.l.b16 %v229
      %v296 = vunpack.c.l.b16 %v230
      %v297 = vunpack.c.l.b16 %v231
      %v298 = vunpack.c.l.b16 %v232
      %v299 = vunpack.c.l.b16 %v233
      %v300 = vunpack.c.l.b16 %v234
      %v301 = vunpack.c.l.b16 %v235
      %v302 = vunpack.c.l.b16 %v236
      %v303 = vunpack.c.l.b16 %v237
      %v304 = vunpack.c.l.b16 %v238
      %v305 = vunpack.c.l.b16 %v239
      %v306 = vunpack.c.l.b16 %v240
      %v307 = vunpack.c.l.b16 %v241
      %v308 = vunpack.c.l.b16 %v242
      %v309 = vunpack.c.l.b16 %v243
      %v310 = vunpack.c.l.b16 %v244
      %v311 = vunpack.c.l.b16 %v245
      %v312 = vunpack.c.l.b16 %v246
      %v313 = vunpack.c.l.b16 %v247
      %v314 = vunpack.c.l.b16 %v248
      %v315 = vunpack.c.l.b16 %v249
      %v316 = vunpack.c.l.b16 %v250
      %v317 = vpack.c.b16 %v286, %v285
      %v318 = vpack.c.b16 %v288, %v287
      %v319 = vpack.c.b16 %v290, %v289
      %v320 = vpack.c.b16 %v292, %v291
      %v321 = vpack.c.b16 %v294, %v293
      %v322 = vpack.c.b16 %v296, %v295
      %v323 = vpack.c.b16 %v298, %v297
      %v324 = vpack.c.b16 %v300, %v299
      %v325 = vpack.c.b16 %v302, %v301
      %v326 = vpack.c.b16 %v304, %v303
      %v327 = vpack.c.b16 %v306, %v305
      %v328 = vpack.c.b16 %v308, %v307
      %v329 = vpack.c.b16 %v310, %v309
      %v330 = vpack.c.b16 %v312, %v311
      %v331 = vpack.c.b16 %v314, %v313
      %v332 = vpack.c.b16 %v316, %v315
      %v335 = vunpack.c.l.b16 %v251
      %v336 = vunpack.c.l.b16 %v252
      %v337 = vpack.c.b16 %v336, %v335
      %vm339 = vcmask 130048
      %v341 = vsel %vm339, %v317, 0
      %v344 = vsel %vm339, %v318, 0
      %v347 = vsel %vm339, %v319, 0
      %v350 = vsel %vm339, %v320, 0
      %v353 = vsel %vm339, %v321, 0
      %v356 = vsel %vm339, %v322, 0
      %v359 = vsel %vm339, %v323, 0
      %v362 = vsel %vm339, %v324, 0
      %v365 = vsel %vm339, %v325, 0
      %v368 = vsel %vm339, %v326, 0
      %v371 = vsel %vm339, %v327, 0
      %v374 = vsel %vm339, %v328, 0
      %v377 = vsel %vm339, %v329, 0
      %v380 = vsel %vm339, %v330, 0
      %v383 = vsel %vm339, %v331, 0
      %v386 = vsel %vm339, %v332, 0
      %388 = vmatprep.subr.bf16.mxu0 0
      %389 = vmatpush1.bf16.msra.mxu0 %v337
      %390 = vmatprep.subr.bf16.mxu0 0
      %391 = vmatpush1.bf16.msra.mxu0 0
      %392 = vmatprep.subr.bf16.mxu0 0
      %393 = vmatpush1.bf16.msra.mxu0 0
      %394 = vmatprep.subr.bf16.mxu0 0
      %395 = vmatpush1.bf16.msra.mxu0 0
      %396 = vmatprep.subr.bf16.mxu0 0
      %397 = vmatpush1.bf16.msra.mxu0 0
      %398 = vmatprep.subr.bf16.mxu0 0
      %399 = vmatpush1.bf16.msra.mxu0 0
      %400 = vmatprep.subr.bf16.mxu0 0
      %401 = vmatpush1.bf16.msra.mxu0 0
      %402 = vmatprep.subr.bf16.mxu0 0
      %403 = vmatpush1.bf16.msra.mxu0 0
      %404 = vmatprep.subr.bf16.mxu0 0
      %405 = vmatpush1.bf16.msra.mxu0 0
      %406 = vmatprep.subr.bf16.mxu0 0
      %407 = vmatpush1.bf16.msra.mxu0 0
      %408 = vmatprep.subr.bf16.mxu0 0
      %409 = vmatpush1.bf16.msra.mxu0 0
      %410 = vmatprep.subr.bf16.mxu0 0
      %411 = vmatpush1.bf16.msra.mxu0 0
      %412 = vmatprep.subr.bf16.mxu0 0
      %413 = vmatpush1.bf16.msra.mxu0 0
      %414 = vmatprep.subr.bf16.mxu0 0
      %415 = vmatpush1.bf16.msra.mxu0 0
      %416 = vmatprep.subr.bf16.mxu0 0
      %417 = vmatpush1.bf16.msra.mxu0 0
      %418 = vmatprep.subr.bf16.mxu0 0
      %419 = vmatpush1.bf16.msra.mxu0 0
      %420 = vmatprep.mubr.bf16.mxu0 0
      %421 = vmatmul.mubr.bf16.gmra.mrb[0].mxu0 %v341
      %v422 = vpop.f32.mrb[0].mxu0
      %v423 = vadd.f32 0.0, %v422
      %v424 = vpop.f32.mrb[0].mxu0
      %v425 = vpop.f32.mrb[0].mxu0
      %v426 = vadd.f32 0.0, %v425
      %v427 = vpop.f32.mrb[0].mxu0
      %428 = vmatprep.mubr.bf16.mxu0 0
      %429 = vmatmul.mubr.bf16.gmra.mrb[0].mxu0 %v344
      %v430 = vpop.f32.mrb[0].mxu0
      %v431 = vadd.f32 0.0, %v430
      %v432 = vpop.f32.mrb[0].mxu0
      %v433 = vpop.f32.mrb[0].mxu0
      %v434 = vadd.f32 0.0, %v433
      %v435 = vpop.f32.mrb[0].mxu0
      %436 = vmatprep.mubr.bf16.mxu0 0
      %437 = vmatmul.mubr.bf16.gmra.mrb[0].mxu0 %v347
      %v438 = vpop.f32.mrb[0].mxu0
      %v439 = vadd.f32 0.0, %v438
      %v440 = vpop.f32.mrb[0].mxu0
      %v441 = vpop.f32.mrb[0].mxu0
      %v442 = vadd.f32 0.0, %v441
      %v443 = vpop.f32.mrb[0].mxu0
      %444 = vmatprep.mubr.bf16.mxu0 0
      %445 = vmatmul.mubr.bf16.gmra.mrb[0].mxu0 %v350
      %v446 = vpop.f32.mrb[0].mxu0
      %v447 = vadd.f32 0.0, %v446
      %v448 = vpop.f32.mrb[0].mxu0
      %v449 = vpop.f32.mrb[0].mxu0
      %v450 = vadd.f32 0.0, %v449
      %v451 = vpop.f32.mrb[0].mxu0
      %452 = vmatprep.mubr.bf16.mxu0 0
      %453 = vmatmul.mubr.bf16.gmra.mrb[0].mxu0 %v353
      %v454 = vpop.f32.mrb[0].mxu0
      %v455 = vadd.f32 0.0, %v454
      %v456 = vpop.f32.mrb[0].mxu0
      %v457 = vpop.f32.mrb[0].mxu0
      %v458 = vadd.f32 0.0, %v457
      %v459 = vpop.f32.mrb[0].mxu0
      %460 = vmatprep.mubr.bf16.mxu0 0
      %461 = vmatmul.mubr.bf16.gmra.mrb[0].mxu0 %v356
      %v462 = vpop.f32.mrb[0].mxu0
      %v463 = vadd.f32 0.0, %v462
      %v464 = vpop.f32.mrb[0].mxu0
      %v465 = vpop.f32.mrb[0].mxu0
      %v466 = vadd.f32 0.0, %v465
      %v467 = vpop.f32.mrb[0].mxu0
      %468 = vmatprep.mubr.bf16.mxu0 0
      %469 = vmatmul.mubr.bf16.gmra.mrb[0].mxu0 %v359
      %v470 = vpop.f32.mrb[0].mxu0
      %v471 = vadd.f32 0.0, %v470
      %v472 = vpop.f32.mrb[0].mxu0
      %v473 = vpop.f32.mrb[0].mxu0
      %v474 = vadd.f32 0.0, %v473
      %v475 = vpop.f32.mrb[0].mxu0
      %476 = vmatprep.mubr.bf16.mxu0 0
      %477 = vmatmul.mubr.bf16.gmra.mrb[0].mxu0 %v362
      %v478 = vpop.f32.mrb[0].mxu0
      %v479 = vadd.f32 0.0, %v478
      %v480 = vpop.f32.mrb[0].mxu0
      %v481 = vpop.f32.mrb[0].mxu0
      %v482 = vadd.f32 0.0, %v481
      %v483 = vpop.f32.mrb[0].mxu0
      %484 = vmatprep.mubr.bf16.mxu0 0
      %485 = vmatmul.mubr.bf16.gmra.mrb[0].mxu0 %v365
      %v486 = vpop.f32.mrb[0].mxu0
      %v487 = vadd.f32 0.0, %v486
      %v488 = vpop.f32.mrb[0].mxu0
      %v489 = vpop.f32.mrb[0].mxu0
      %v490 = vadd.f32 0.0, %v489
      %v491 = vpop.f32.mrb[0].mxu0
      %492 = vmatprep.mubr.bf16.mxu0 0
      %493 = vmatmul.mubr.bf16.gmra.mrb[0].mxu0 %v368
      %v494 = vpop.f32.mrb[0].mxu0
      %v495 = vadd.f32 0.0, %v494
      %v496 = vpop.f32.mrb[0].mxu0
      %v497 = vpop.f32.mrb[0].mxu0
      %v498 = vadd.f32 0.0, %v497
      %v499 = vpop.f32.mrb[0].mxu0
      %500 = vmatprep.mubr.bf16.mxu0 0
      %501 = vmatmul.mubr.bf16.gmra.mrb[0].mxu0 %v371
      %v502 = vpop.f32.mrb[0].mxu0
      %v503 = vadd.f32 0.0, %v502
      %v504 = vpop.f32.mrb[0].mxu0
      %v505 = vpop.f32.mrb[0].mxu0
      %v506 = vadd.f32 0.0, %v505
      %v507 = vpop.f32.mrb[0].mxu0
      %508 = vmatprep.mubr.bf16.mxu0 0
      %509 = vmatmul.mubr.bf16.gmra.mrb[0].mxu0 %v374
      %v510 = vpop.f32.mrb[0].mxu0
      %v511 = vadd.f32 0.0, %v510
      %v512 = vpop.f32.mrb[0].mxu0
      %v513 = vpop.f32.mrb[0].mxu0
      %v514 = vadd.f32 0.0, %v513
      %v515 = vpop.f32.mrb[0].mxu0
      %516 = vmatprep.mubr.bf16.mxu0 0
      %517 = vmatmul.mubr.bf16.gmra.mrb[0].mxu0 %v377
      %v518 = vpop.f32.mrb[0].mxu0
      %v519 = vadd.f32 0.0, %v518
      %v520 = vpop.f32.mrb[0].mxu0
      %v521 = vpop.f32.mrb[0].mxu0
      %v522 = vadd.f32 0.0, %v521
      %v523 = vpop.f32.mrb[0].mxu0
      %524 = vmatprep.mubr.bf16.mxu0 0
      %525 = vmatmul.mubr.bf16.gmra.mrb[0].mxu0 %v380
      %v526 = vpop.f32.mrb[0].mxu0
      %v527 = vadd.f32 0.0, %v526
      %v528 = vpop.f32.mrb[0].mxu0
      %v529 = vpop.f32.mrb[0].mxu0
      %v530 = vadd.f32 0.0, %v529
      %v531 = vpop.f32.mrb[0].mxu0
      %532 = vmatprep.mubr.bf16.mxu0 0
      %533 = vmatmul.mubr.bf16.gmra.mrb[0].mxu0 %v383
      %v534 = vpop.f32.mrb[0].mxu0
      %v535 = vadd.f32 0.0, %v534
      %v536 = vpop.f32.mrb[0].mxu0
      %v537 = vpop.f32.mrb[0].mxu0
      %v538 = vadd.f32 0.0, %v537
      %v539 = vpop.f32.mrb[0].mxu0
      %540 = vmatprep.mubr.bf16.mxu0 0
      %541 = vmatmul.mubr.bf16.gmra.mrb[0].mxu0 %v386
      %v542 = vpop.f32.mrb[0].mxu0
      %v543 = vadd.f32 0.0, %v542
      %v544 = vpop.f32.mrb[0].mxu0
      %v545 = vpop.f32.mrb[0].mxu0
      %v546 = vadd.f32 0.0, %v545
      %v547 = vpop.f32.mrb[0].mxu0
      %548 = vdwg.mxu0
      %v549 = vpack.c.bf16 %v426, %v423
      %v550 = vpack.c.bf16 %v434, %v431
      %v551 = vpack.c.bf16 %v442, %v439
      %v552 = vpack.c.bf16 %v450, %v447
      %v553 = vpack.c.bf16 %v458, %v455
      %v554 = vpack.c.bf16 %v466, %v463
      %v555 = vpack.c.bf16 %v474, %v471
      %v556 = vpack.c.bf16 %v482, %v479
      %v557 = vpack.c.bf16 %v490, %v487
      %v558 = vpack.c.bf16 %v498, %v495
      %v559 = vpack.c.bf16 %v506, %v503
      %v560 = vpack.c.bf16 %v514, %v511
      %v561 = vpack.c.bf16 %v522, %v519
      %v562 = vpack.c.bf16 %v530, %v527
      %v563 = vpack.c.bf16 %v538, %v535
      %v564 = vpack.c.bf16 %v546, %v543
      %v581 = vunpack.c.l.b16 %v549
      %v582 = vunpack.c.h.b16 %v549
      %v583 = vunpack.c.l.b16 %v550
      %v584 = vunpack.c.h.b16 %v550
      %v585 = vunpack.c.l.b16 %v551
      %v586 = vunpack.c.h.b16 %v551
      %v587 = vunpack.c.l.b16 %v552
      %v588 = vunpack.c.h.b16 %v552
      %v589 = vunpack.c.l.b16 %v553
      %v590 = vunpack.c.h.b16 %v553
      %v591 = vunpack.c.l.b16 %v554
      %v592 = vunpack.c.h.b16 %v554
      %v593 = vunpack.c.l.b16 %v555
      %v594 = vunpack.c.h.b16 %v555
      %v595 = vunpack.c.l.b16 %v556
      %v596 = vunpack.c.h.b16 %v556
      %v597 = vunpack.c.l.b16 %v557
      %v598 = vunpack.c.h.b16 %v557
      %v599 = vunpack.c.l.b16 %v558
      %v600 = vunpack.c.h.b16 %v558
      %v601 = vunpack.c.l.b16 %v559
      %v602 = vunpack.c.h.b16 %v559
      %v603 = vunpack.c.l.b16 %v560
      %v604 = vunpack.c.h.b16 %v560
      %v605 = vunpack.c.l.b16 %v561
      %v606 = vunpack.c.h.b16 %v561
      %v607 = vunpack.c.l.b16 %v562
      %v608 = vunpack.c.h.b16 %v562
      %v609 = vunpack.c.l.b16 %v563
      %v610 = vunpack.c.h.b16 %v563
      %v611 = vunpack.c.l.b16 %v564
      %v612 = vunpack.c.h.b16 %v564
      %v613 = vpack.c.b16 %v581, %v581
      %v614 = vpack.c.b16 %v582, %v582
      %v615 = vpack.c.b16 %v583, %v583
      %v616 = vpack.c.b16 %v584, %v584
      %v617 = vpack.c.b16 %v585, %v585
      %v618 = vpack.c.b16 %v586, %v586
      %v619 = vpack.c.b16 %v587, %v587
      %v620 = vpack.c.b16 %v588, %v588
      %v621 = vpack.c.b16 %v589, %v589
      %v622 = vpack.c.b16 %v590, %v590
      %v623 = vpack.c.b16 %v591, %v591
      %v624 = vpack.c.b16 %v592, %v592
      %v625 = vpack.c.b16 %v593, %v593
      %v626 = vpack.c.b16 %v594, %v594
      %v627 = vpack.c.b16 %v595, %v595
      %v628 = vpack.c.b16 %v596, %v596
      %v629 = vpack.c.b16 %v597, %v597
      %v630 = vpack.c.b16 %v598, %v598
      %v631 = vpack.c.b16 %v599, %v599
      %v632 = vpack.c.b16 %v600, %v600
      %v633 = vpack.c.b16 %v601, %v601
      %v634 = vpack.c.b16 %v602, %v602
      %v635 = vpack.c.b16 %v603, %v603
      %v636 = vpack.c.b16 %v604, %v604
      %v637 = vpack.c.b16 %v605, %v605
      %v638 = vpack.c.b16 %v606, %v606
      %v639 = vpack.c.b16 %v607, %v607
      %v640 = vpack.c.b16 %v608, %v608
      %v641 = vpack.c.b16 %v609, %v609
      %v642 = vpack.c.b16 %v610, %v610
      %v643 = vpack.c.b16 %v611, %v611
      %v644 = vpack.c.b16 %v612, %v612
      %vm677 = vcmask 257024
      %678 = vst.msk [vmem:[%s210] sm:$0xf] %vm677, %v613
      %679 = vst.msk [vmem:[%s210 + $0x4] sm:$0xf] %vm677, %v614
      %680 = vst.msk [vmem:[%s210 + $0x8] sm:$0xf] %vm677, %v615
      %681 = vst.msk [vmem:[%s210 + $0xc] sm:$0xf] %vm677, %v616
      %682 = vst.msk [vmem:[%s210 + $0x10] sm:$0xf] %vm677, %v617
      %683 = vst.msk [vmem:[%s210 + $0x14] sm:$0xf] %vm677, %v618
      %684 = vst.msk [vmem:[%s210 + $0x18] sm:$0xf] %vm677, %v619
      %685 = vst.msk [vmem:[%s210 + $0x1c] sm:$0xf] %vm677, %v620
      %686 = vst.msk [vmem:[%s210 + $0x20] sm:$0xf] %vm677, %v621
      %687 = vst.msk [vmem:[%s210 + $0x24] sm:$0xf] %vm677, %v622
      %688 = vst.msk [vmem:[%s210 + $0x28] sm:$0xf] %vm677, %v623
      %689 = vst.msk [vmem:[%s210 + $0x2c] sm:$0xf] %vm677, %v624
      %690 = vst.msk [vmem:[%s210 + $0x30] sm:$0xf] %vm677, %v625
      %691 = vst.msk [vmem:[%s210 + $0x34] sm:$0xf] %vm677, %v626
      %692 = vst.msk [vmem:[%s210 + $0x38] sm:$0xf] %vm677, %v627
      %693 = vst.msk [vmem:[%s210 + $0x3c] sm:$0xf] %vm677, %v628
      %694 = vst.msk [vmem:[%s210 + $0x40] sm:$0xf] %vm677, %v629
      %695 = vst.msk [vmem:[%s210 + $0x44] sm:$0xf] %vm677, %v630
      %696 = vst.msk [vmem:[%s210 + $0x48] sm:$0xf] %vm677, %v631
      %697 = vst.msk [vmem:[%s210 + $0x4c] sm:$0xf] %vm677, %v632
      %698 = vst.msk [vmem:[%s210 + $0x50] sm:$0xf] %vm677, %v633
      %699 = vst.msk [vmem:[%s210 + $0x54] sm:$0xf] %vm677, %v634
      %700 = vst.msk [vmem:[%s210 + $0x58] sm:$0xf] %vm677, %v635
      %701 = vst.msk [vmem:[%s210 + $0x5c] sm:$0xf] %vm677, %v636
      %702 = vst.msk [vmem:[%s210 + $0x60] sm:$0xf] %vm677, %v637
      %703 = vst.msk [vmem:[%s210 + $0x64] sm:$0xf] %vm677, %v638
      %704 = vst.msk [vmem:[%s210 + $0x68] sm:$0xf] %vm677, %v639
      %705 = vst.msk [vmem:[%s210 + $0x6c] sm:$0xf] %vm677, %v640
      %706 = vst.msk [vmem:[%s210 + $0x70] sm:$0xf] %vm677, %v641
      %707 = vst.msk [vmem:[%s210 + $0x74] sm:$0xf] %vm677, %v642
      %708 = vst.msk [vmem:[%s210 + $0x78] sm:$0xf] %vm677, %v643
      %709 = vst.msk [vmem:[%s210 + $0x7c] sm:$0xf] %vm677, %v644
      %vm710 = vcmask 261120
      %v711 = vsel %vm710, %v423, 0.0
      %v712 = vsel %vm710, %v426, 0.0
      %v713 = vadd.f32 %v711, %v712
      %v714 = vsel %vm710, %v431, 0.0
      %v715 = vadd.f32 %v713, %v714
      %v716 = vsel %vm710, %v434, 0.0
      %v717 = vadd.f32 %v715, %v716
      %v718 = vsel %vm710, %v439, 0.0
      %v719 = vadd.f32 %v717, %v718
      %v720 = vsel %vm710, %v442, 0.0
      %v721 = vadd.f32 %v719, %v720
      %v722 = vsel %vm710, %v447, 0.0
      %v723 = vadd.f32 %v721, %v722
      %v724 = vsel %vm710, %v450, 0.0
      %v725 = vadd.f32 %v723, %v724
      %v726 = vsel %vm710, %v455, 0.0
      %v727 = vadd.f32 %v725, %v726
      %v728 = vsel %vm710, %v458, 0.0
      %v729 = vadd.f32 %v727, %v728
      %v730 = vsel %vm710, %v463, 0.0
      %v731 = vadd.f32 %v729, %v730
      %v732 = vsel %vm710, %v466, 0.0
      %v733 = vadd.f32 %v731, %v732
      %v734 = vsel %vm710, %v471, 0.0
      %v735 = vadd.f32 %v733, %v734
      %v736 = vsel %vm710, %v474, 0.0
      %v737 = vadd.f32 %v735, %v736
      %v738 = vsel %vm710, %v479, 0.0
      %v739 = vadd.f32 %v737, %v738
      %v740 = vsel %vm710, %v482, 0.0
      %v741 = vadd.f32 %v739, %v740
      %v742 = vsel %vm710, %v487, 0.0
      %v743 = vadd.f32 %v741, %v742
      %v744 = vsel %vm710, %v490, 0.0
      %v745 = vadd.f32 %v743, %v744
      %v746 = vsel %vm710, %v495, 0.0
      %v747 = vadd.f32 %v745, %v746
      %v748 = vsel %vm710, %v498, 0.0
      %v749 = vadd.f32 %v747, %v748
      %v750 = vsel %vm710, %v503, 0.0
      %v751 = vadd.f32 %v749, %v750
      %v752 = vsel %vm710, %v506, 0.0
      %v753 = vadd.f32 %v751, %v752
      %v754 = vsel %vm710, %v511, 0.0
      %v755 = vadd.f32 %v753, %v754
      %v756 = vsel %vm710, %v514, 0.0
      %v757 = vadd.f32 %v755, %v756
      %v758 = vsel %vm710, %v519, 0.0
      %v759 = vadd.f32 %v757, %v758
      %v760 = vsel %vm710, %v522, 0.0
      %v761 = vadd.f32 %v759, %v760
      %v762 = vsel %vm710, %v527, 0.0
      %v763 = vadd.f32 %v761, %v762
      %v764 = vsel %vm710, %v530, 0.0
      %v765 = vadd.f32 %v763, %v764
      %v766 = vsel %vm710, %v535, 0.0
      %v767 = vadd.f32 %v765, %v766
      %v768 = vsel %vm710, %v538, 0.0
      %v769 = vadd.f32 %v767, %v768
      %v770 = vsel %vm710, %v543, 0.0
      %v771 = vadd.f32 %v769, %v770
      %v772 = vsel %vm710, %v546, 0.0
      %v773 = vadd.f32 %v771, %v772
      %v774 = vrot.slane %v773, 4
      %v775 = vadd.f32 %v773, %v774
      %v776 = vrot.slane %v775, 2
      %v777 = vadd.f32 %v775, %v776
      %v778 = vrot.slane %v777, 1
      %v779 = vadd.f32 %v777, %v778
      %v780 = vmul.f32 %v423, %v423
      %v781 = vmul.f32 %v426, %v426
      %v782 = vmul.f32 %v431, %v431
      %v783 = vmul.f32 %v434, %v434
      %v784 = vmul.f32 %v439, %v439
      %v785 = vmul.f32 %v442, %v442
      %v786 = vmul.f32 %v447, %v447
      %v787 = vmul.f32 %v450, %v450
      %v788 = vmul.f32 %v455, %v455
      %v789 = vmul.f32 %v458, %v458
      %v790 = vmul.f32 %v463, %v463
      %v791 = vmul.f32 %v466, %v466
      %v792 = vmul.f32 %v471, %v471
      %v793 = vmul.f32 %v474, %v474
      %v794 = vmul.f32 %v479, %v479
      %v795 = vmul.f32 %v482, %v482
      %v796 = vmul.f32 %v487, %v487
      %v797 = vmul.f32 %v490, %v490
      %v798 = vmul.f32 %v495, %v495
      %v799 = vmul.f32 %v498, %v498
      %v800 = vmul.f32 %v503, %v503
      %v801 = vmul.f32 %v506, %v506
      %v802 = vmul.f32 %v511, %v511
      %v803 = vmul.f32 %v514, %v514
      %v804 = vmul.f32 %v519, %v519
      %v805 = vmul.f32 %v522, %v522
      %v806 = vmul.f32 %v527, %v527
      %v807 = vmul.f32 %v530, %v530
      %v808 = vmul.f32 %v535, %v535
      %v809 = vmul.f32 %v538, %v538
      %v810 = vmul.f32 %v543, %v543
      %v811 = vmul.f32 %v546, %v546
      %v812 = vsel %vm710, %v780, 0.0
      %v813 = vsel %vm710, %v781, 0.0
      %v814 = vadd.f32 %v812, %v813
      %v815 = vsel %vm710, %v782, 0.0
      %v816 = vadd.f32 %v814, %v815
      %v817 = vsel %vm710, %v783, 0.0
      %v818 = vadd.f32 %v816, %v817
      %v819 = vsel %vm710, %v784, 0.0
      %v820 = vadd.f32 %v818, %v819
      %v821 = vsel %vm710, %v785, 0.0
      %v822 = vadd.f32 %v820, %v821
      %v823 = vsel %vm710, %v786, 0.0
      %v824 = vadd.f32 %v822, %v823
      %v825 = vsel %vm710, %v787, 0.0
      %v826 = vadd.f32 %v824, %v825
      %v827 = vsel %vm710, %v788, 0.0
      %v828 = vadd.f32 %v826, %v827
      %v829 = vsel %vm710, %v789, 0.0
      %v830 = vadd.f32 %v828, %v829
      %v831 = vsel %vm710, %v790, 0.0
      %v832 = vadd.f32 %v830, %v831
      %v833 = vsel %vm710, %v791, 0.0
      %v834 = vadd.f32 %v832, %v833
      %v835 = vsel %vm710, %v792, 0.0
      %v836 = vadd.f32 %v834, %v835
      %v837 = vsel %vm710, %v793, 0.0
      %v838 = vadd.f32 %v836, %v837
      %v839 = vsel %vm710, %v794, 0.0
      %v840 = vadd.f32 %v838, %v839
      %v841 = vsel %vm710, %v795, 0.0
      %v842 = vadd.f32 %v840, %v841
      %v843 = vsel %vm710, %v796, 0.0
      %v844 = vadd.f32 %v842, %v843
      %v845 = vsel %vm710, %v797, 0.0
      %v846 = vadd.f32 %v844, %v845
      %v847 = vsel %vm710, %v798, 0.0
      %v848 = vadd.f32 %v846, %v847
      %v849 = vsel %vm710, %v799, 0.0
      %v850 = vadd.f32 %v848, %v849
      %v851 = vsel %vm710, %v800, 0.0
      %v852 = vadd.f32 %v850, %v851
      %v853 = vsel %vm710, %v801, 0.0
      %v854 = vadd.f32 %v852, %v853
      %v855 = vsel %vm710, %v802, 0.0
      %v856 = vadd.f32 %v854, %v855
      %v857 = vsel %vm710, %v803, 0.0
      %v858 = vadd.f32 %v856, %v857
      %v859 = vsel %vm710, %v804, 0.0
      %v860 = vadd.f32 %v858, %v859
      %v861 = vsel %vm710, %v805, 0.0
      %v862 = vadd.f32 %v860, %v861
      %v863 = vsel %vm710, %v806, 0.0
      %v864 = vadd.f32 %v862, %v863
      %v865 = vsel %vm710, %v807, 0.0
      %v866 = vadd.f32 %v864, %v865
      %v867 = vsel %vm710, %v808, 0.0
      %v868 = vadd.f32 %v866, %v867
      %v869 = vsel %vm710, %v809, 0.0
      %v870 = vadd.f32 %v868, %v869
      %v871 = vsel %vm710, %v810, 0.0
      %v872 = vadd.f32 %v870, %v871
      %v873 = vsel %vm710, %v811, 0.0
      %v874 = vadd.f32 %v872, %v873
      %v875 = vrot.slane %v874, 4
      %v876 = vadd.f32 %v874, %v875
      %v877 = vrot.slane %v876, 2
      %v878 = vadd.f32 %v876, %v877
      %v879 = vrot.slane %v878, 1
      %v880 = vadd.f32 %v878, %v879
      %vm881 = vcmask 253952
      %882 = vst.msk [vmem:[%s214] sm:$0x1] %vm881, %v779
      %883 = vst.msk [vmem:[%s217] sm:$0x1] %vm881, %v880
      %s884 = smul.u32 32, %s16
      %p885 = scmp.lt.s32.totalorder %s884, 63
      %s886 = scalar_select %p885, %s884, 63
      %s887 = smul.addr %s886, 4
      %s888 = scalar_lea.vmem %s2, %s887
      %p889 = scmp.lt.s32.totalorder %s16, 1
      %s890 = scalar_select %p889, %s16, 1
      %s891 = scalar_lea.vmem %s3, %s890
      %p892 = scmp.lt.s32.totalorder %s16, 1
      %s893 = scalar_select %p892, %s16, 1
      %s894 = scalar_lea.vmem %s4, %s893
      // Predicated region
      $region29: #{_lambda_.2} parent=27 // pred_check
        %p895 = pneg %p81
      $region30: #{_lambda_.2} parent=27 // pred_check_branch
        %897 = sbr.rel (%p895) target = $region32
      $region31: #{_lambda_.2} parent=27 // pred_region
        %s898 = smul.u32 32, %s16
      $region32: #{_lambda_.2} parent=27 // pred_fallthru
        _
      // Predicated region
      $region33: #{_lambda_.2} parent=27 // pred_check
        %p899 = pneg %p107
      $region34: #{_lambda_.2} parent=27 // pred_check_branch
        %901 = sbr.rel (%p899) target = $region36
      $region35: #{_lambda_.2} parent=27 // pred_region
        _
      $region36: #{_lambda_.2} parent=27 // pred_fallthru
        _
      // Predicated region
      $region37: #{_lambda_.2} parent=27 // pred_check
        %p902 = pneg %p133
      $region38: #{_lambda_.2} parent=27 // pred_check_branch
        %904 = sbr.rel (%p902) target = $region40
      $region39: #{_lambda_.2} parent=27 // pred_region
        _
      $region40: #{_lambda_.2} parent=27 // pred_fallthru
        _
    $region28: #{_lambda_.2} parent=5 // pred_fallthru
      _
    %p905 = scmp.le.s32.totalorder 2, %s11
    // Predicated region
    $region41: #{_lambda_.2} parent=5 // pred_check
      %p906 = pneg %p905
    $region42: #{_lambda_.2} parent=5 // pred_check_branch
      %908 = sbr.rel (%p906) target = $region44
    $region43: #{_lambda_.2} parent=5 // pred_region
      %s909 = ssub.s32 %s11, 2
      // Predicated region
      $region45: #{_lambda_.2} parent=43 // pred_check
        %p910 = pneg %p87
      $region46: #{_lambda_.2} parent=43 // pred_check_branch
        %912 = sbr.rel (%p910) target = $region48
      $region47: #{_lambda_.2} parent=43 // pred_region
        %s913 = smul.u32 32, %s17
        %p914 = scmp.lt.s32.totalorder %s913, 63
        %s915 = scalar_select %p914, %s913, 63
        %s916 = smul.addr %s915, 4
        %s917 = scalar_lea.vmem %s2, %s916
      $region48: #{_lambda_.2} parent=43 // pred_fallthru
        _
      // Predicated region
      $region49: #{_lambda_.2} parent=43 // pred_check
        %p918 = pneg %p113
      $region50: #{_lambda_.2} parent=43 // pred_check_branch
        %920 = sbr.rel (%p918) target = $region52
      $region51: #{_lambda_.2} parent=43 // pred_region
        %p921 = scmp.lt.s32.totalorder %s17, 1
        %s922 = scalar_select %p921, %s17, 1
        %s923 = scalar_lea.vmem %s3, %s922
      $region52: #{_lambda_.2} parent=43 // pred_fallthru
        _
      // Predicated region
      $region53: #{_lambda_.2} parent=43 // pred_check
        %p924 = pneg %p139
      $region54: #{_lambda_.2} parent=43 // pred_check_branch
        %926 = sbr.rel (%p924) target = $region56
      $region55: #{_lambda_.2} parent=43 // pred_region
        %p927 = scmp.lt.s32.totalorder %s17, 1
        %s928 = scalar_select %p927, %s17, 1
        %s929 = scalar_lea.vmem %s4, %s928
      $region56: #{_lambda_.2} parent=43 // pred_fallthru
        _
    $region44: #{_lambda_.2} parent=5 // pred_fallthru
      _
  $region6: #{_lambda_.2} parent=0 // loop_footer
    %s15 = sadd.s32 1, %s11
  $region7: #{_lambda_.2} parent=0 // loop_footer_branch
    %10 = sbr.rel target = $region3
  $region8: #{_lambda_.2} parent=0 // loop_exit
    _

// kernel: _lambda_.3
$region0: #{_lambda_.3}
  #allocation0 [shape = 'u32[]', space=smem, size = 0x4, offset = 0x4, fixed_abs, tag = 'smem constant byte address 0x4 - core index']
  #allocation1 [shape = 'u32[144,128]{1,0:T(1,128)}', space=vmem, size = 0x12000, scoped, tag = 'internal scratch']
  %s0 = inlined_call_operand.vmem [shape: bf16[128,128], index: 0, kind: input, shape index: {}]
  %s1 = inlined_call_operand.vmem [shape: f32[1,128], index: 1, kind: input, shape index: {}]
  %s2 = inlined_call_operand.vmem [shape: f32[1,128], index: 2, kind: input, shape index: {}]
  %s3 = inlined_call_operand.vmem [shape: f32[128,128], index: 3, kind: output, shape index: {}]
  %s4 = sld [smem:[#allocation0]]
  $region22: #{_lambda_.3} parent=0
    _
  %s6 = ssub.s32 1, %s4
  %s7 = scalar_select 0, %s6, %s4
  // Predicated region
  $region2: #{_lambda_.3} parent=0 // pred_check
    _
  $region3: #{_lambda_.3} parent=0 // pred_check_branch
    %9 = sbr.rel (0) target = $region5
  $region4: #{_lambda_.3} parent=0 // pred_region
    _
  $region5: #{_lambda_.3} parent=0 // pred_fallthru
    _
  // Predicated region
  $region6: #{_lambda_.3} parent=0 // pred_check
    _
  $region7: #{_lambda_.3} parent=0 // pred_check_branch
    %11 = sbr.rel (0) target = $region9
  $region8: #{_lambda_.3} parent=0 // pred_region
    _
  $region9: #{_lambda_.3} parent=0 // pred_fallthru
    _
  // Predicated region
  $region10: #{_lambda_.3} parent=0 // pred_check
    _
  $region11: #{_lambda_.3} parent=0 // pred_check_branch
    %13 = sbr.rel (0) target = $region13
  $region12: #{_lambda_.3} parent=0 // pred_region
    _
  $region13: #{_lambda_.3} parent=0 // pred_fallthru
    _
  %v14 = vld [vmem:[%s0] sm:$0xf]
  %v15 = vld [vmem:[%s0 + $0x4] sm:$0xf]
  %v16 = vld [vmem:[%s0 + $0x8] sm:$0xf]
  %v17 = vld [vmem:[%s0 + $0xc] sm:$0xf]
  %v18 = vld [vmem:[%s0 + $0x10] sm:$0xf]
  %v19 = vld [vmem:[%s0 + $0x14] sm:$0xf]
  %v20 = vld [vmem:[%s0 + $0x18] sm:$0xf]
  %v21 = vld [vmem:[%s0 + $0x1c] sm:$0xf]
  %v22 = vld [vmem:[%s0 + $0x20] sm:$0xf]
  %v23 = vld [vmem:[%s0 + $0x24] sm:$0xf]
  %v24 = vld [vmem:[%s0 + $0x28] sm:$0xf]
  %v25 = vld [vmem:[%s0 + $0x2c] sm:$0xf]
  %v26 = vld [vmem:[%s0 + $0x30] sm:$0xf]
  %v27 = vld [vmem:[%s0 + $0x34] sm:$0xf]
  %v28 = vld [vmem:[%s0 + $0x38] sm:$0xf]
  %v29 = vld [vmem:[%s0 + $0x3c] sm:$0xf]
  %v30 = vunpack.c.l.bf16 %v14
  %v31 = vunpack.c.l.bf16 %v15
  %v32 = vunpack.c.l.bf16 %v16
  %v33 = vunpack.c.l.bf16 %v17
  %v34 = vunpack.c.l.bf16 %v18
  %v35 = vunpack.c.l.bf16 %v19
  %v36 = vunpack.c.l.bf16 %v20
  %v37 = vunpack.c.l.bf16 %v21
  %v38 = vunpack.c.l.bf16 %v22
  %v39 = vunpack.c.l.bf16 %v23
  %v40 = vunpack.c.l.bf16 %v24
  %v41 = vunpack.c.l.bf16 %v25
  %v42 = vunpack.c.l.bf16 %v26
  %v43 = vunpack.c.l.bf16 %v27
  %v44 = vunpack.c.l.bf16 %v28
  %v45 = vunpack.c.l.bf16 %v29
  %v46 = vld [vmem:[%s1] sm:$0x1]
  %v48 = vlaneseq
  %v49 = vshrl.u32 %v48, 7
  %v50 = vsub.s32 0, %v49
  %v51 = vrot.slane %v46, %v50
  %v53 = vmul.f32 %v30, %v51
  %v54 = vmul.f32 %v31, %v51
  %v55 = vmul.f32 %v32, %v51
  %v56 = vmul.f32 %v33, %v51
  %v57 = vmul.f32 %v34, %v51
  %v58 = vmul.f32 %v35, %v51
  %v59 = vmul.f32 %v36, %v51
  %v60 = vmul.f32 %v37, %v51
  %v61 = vmul.f32 %v38, %v51
  %v62 = vmul.f32 %v39, %v51
  %v63 = vmul.f32 %v40, %v51
  %v64 = vmul.f32 %v41, %v51
  %v65 = vmul.f32 %v42, %v51
  %v66 = vmul.f32 %v43, %v51
  %v67 = vmul.f32 %v44, %v51
  %v68 = vmul.f32 %v45, %v51
  %v69 = vld [vmem:[%s2] sm:$0x1]
  %v71 = vlaneseq
  %v72 = vshrl.u32 %v71, 7
  %v73 = vsub.s32 0, %v72
  %v74 = vrot.slane %v69, %v73
  %v76 = vadd.f32 %v53, %v74
  %v77 = vadd.f32 %v54, %v74
  %v78 = vadd.f32 %v55, %v74
  %v79 = vadd.f32 %v56, %v74
  %v80 = vadd.f32 %v57, %v74
  %v81 = vadd.f32 %v58, %v74
  %v82 = vadd.f32 %v59, %v74
  %v83 = vadd.f32 %v60, %v74
  %v84 = vadd.f32 %v61, %v74
  %v85 = vadd.f32 %v62, %v74
  %v86 = vadd.f32 %v63, %v74
  %v87 = vadd.f32 %v64, %v74
  %v88 = vadd.f32 %v65, %v74
  %v89 = vadd.f32 %v66, %v74
  %v90 = vadd.f32 %v67, %v74
  %v91 = vadd.f32 %v68, %v74
  %v92 = vmax.f32 %v76, 0.0
  %v93 = vmax.f32 %v77, 0.0
  %v94 = vmax.f32 %v78, 0.0
  %v95 = vmax.f32 %v79, 0.0
  %v96 = vmax.f32 %v80, 0.0
  %v97 = vmax.f32 %v81, 0.0
  %v98 = vmax.f32 %v82, 0.0
  %v99 = vmax.f32 %v83, 0.0
  %v100 = vmax.f32 %v84, 0.0
  %v101 = vmax.f32 %v85, 0.0
  %v102 = vmax.f32 %v86, 0.0
  %v103 = vmax.f32 %v87, 0.0
  %v104 = vmax.f32 %v88, 0.0
  %v105 = vmax.f32 %v89, 0.0
  %v106 = vmax.f32 %v90, 0.0
  %v107 = vmax.f32 %v91, 0.0
  %108 = vst [vmem:[%s3] sm:$0xff] %v92
  %109 = vst [vmem:[%s3 + $0x8] sm:$0xff] %v93
  %110 = vst [vmem:[%s3 + $0x10] sm:$0xff] %v94
  %111 = vst [vmem:[%s3 + $0x18] sm:$0xff] %v95
  %112 = vst [vmem:[%s3 + $0x20] sm:$0xff] %v96
  %113 = vst [vmem:[%s3 + $0x28] sm:$0xff] %v97
  %114 = vst [vmem:[%s3 + $0x30] sm:$0xff] %v98
  %115 = vst [vmem:[%s3 + $0x38] sm:$0xff] %v99
  %116 = vst [vmem:[%s3 + $0x40] sm:$0xff] %v100
  %117 = vst [vmem:[%s3 + $0x48] sm:$0xff] %v101
  %118 = vst [vmem:[%s3 + $0x50] sm:$0xff] %v102
  %119 = vst [vmem:[%s3 + $0x58] sm:$0xff] %v103
  %120 = vst [vmem:[%s3 + $0x60] sm:$0xff] %v104
  %121 = vst [vmem:[%s3 + $0x68] sm:$0xff] %v105
  %122 = vst [vmem:[%s3 + $0x70] sm:$0xff] %v106
  %123 = vst [vmem:[%s3 + $0x78] sm:$0xff] %v107
  // Predicated region
  $region14: #{_lambda_.3} parent=0 // pred_check
    _
  $region15: #{_lambda_.3} parent=0 // pred_check_branch
    %125 = sbr.rel (0) target = $region17
  $region16: #{_lambda_.3} parent=0 // pred_region
    _
  $region17: #{_lambda_.3} parent=0 // pred_fallthru
    _
  // Predicated region
  $region18: #{_lambda_.3} parent=0 // pred_check
    _
  $region19: #{_lambda_.3} parent=0 // pred_check_branch
    %127 = sbr.rel (0) target = $region21
  $region20: #{_lambda_.3} parent=0 // pred_region
    _
  $region21: #{_lambda_.3} parent=0 // pred_fallthru
    _

</llo_original>
